<compile_context>
chip_gen: v6e
topology: v6e:2x2x1
jax: 0.10.0
libtpu: 0.0.40
codegen_flags: <defaults>
</compile_context>

<pallas_src>
import functools
import math

import jax
import jax.numpy as jnp
from jax.experimental import pallas as pl
from jax.experimental.pallas import tpu as pltpu


def _round_up(x, m):
    return (x + m - 1) // m * m


def _music_lstm_kernel(x_ref, rec_ref, cx_ref, wih_t_ref, wfc_t_ref, bfc_ref,
                       idx_ref, *, hp):
    """LSTMCell (with precomputed recurrent bias) + fc + argmax for one batch."""
    x = x_ref[0]                                     # (Tpad, Dp)

    # gates = x @ W_ih^T + (hx0 @ W_hh^T + b_ih + b_hh)   -> (Tpad, 4*Hp)
    gates = (jnp.dot(x, wih_t_ref[...], preferred_element_type=jnp.float32)
             + rec_ref[...])                         # (1, 4Hp) broadcasts

    i_g = jax.nn.sigmoid(gates[:, 0 * hp:1 * hp])
    f_g = jax.nn.sigmoid(gates[:, 1 * hp:2 * hp])
    g_g = jnp.tanh(gates[:, 2 * hp:3 * hp])
    o_g = jax.nn.sigmoid(gates[:, 3 * hp:4 * hp])

    c_new = f_g * cx_ref[...] + i_g * g_g            # cx (1, Hp) broadcasts
    h_new = o_g * jnp.tanh(c_new)

    # fc: logits = h_new @ W_fc^T + b_fc   -> (Tpad, Dp); padded lanes = -1e30
    logits = (jnp.dot(h_new, wfc_t_ref[...], preferred_element_type=jnp.float32)
              + bfc_ref[...])

    # argmax along last dim (first-occurrence tie-break, like torch.argmax)
    col = jax.lax.broadcasted_iota(jnp.int32, logits.shape, 1)
    maxv = jnp.max(logits, axis=-1, keepdims=True)
    big = jnp.int32(logits.shape[-1])
    idx = jnp.min(jnp.where(logits == maxv, col, big), axis=-1, keepdims=True)

    idx_ref[0] = idx                                 # (Tpad, 1) int32


def music_inference_indices(X, params):
    """Argmax indices of fc(LSTMCell(x_t, (hx0, cx0))) for all t: (B, Tx) int32."""
    B, Tx, D = X.shape
    H = params["hidden_size"]
    Dp = _round_up(D, 128)
    Hp = _round_up(H, 128)
    Tp = _round_up(Tx, 8)

    f32 = jnp.float32

    # inputs, batch-major, zero-padded to (B, Tp, Dp)
    Xp = jnp.zeros((B, Tp, Dp), f32).at[:, :Tx, :D].set(X.astype(f32))

    # recurrent part is constant per batch row: fold into a (B, 4*Hp) bias,
    # gate-blocked padding so each gate occupies a full 128-lane slice.
    rec = (params["hx"] @ params["W_hh"].T
           + params["b_ih"] + params["b_hh"])                       # (B, 4H)
    rec_p = (jnp.zeros((B, 4, Hp), f32)
             .at[:, :, :H].set(rec.reshape(B, 4, H))
             .reshape(B, 4 * Hp))

    cx_p = jnp.zeros((B, Hp), f32).at[:, :H].set(params["cx"])

    # W_ih: (4H, D) -> gate-block-padded, transposed -> (Dp, 4*Hp)
    wih_p = (jnp.zeros((4, Hp, Dp), f32)
             .at[:, :H, :D].set(params["W_ih"].reshape(4, H, D))
             .reshape(4 * Hp, Dp))
    wih_t_p = wih_p.T                                               # (Dp, 4Hp)

    # W_fc: (D, H) -> transposed & padded -> (Hp, Dp); padded logit lanes get
    # a huge negative bias so argmax never selects them.
    wfc_t_p = jnp.zeros((Hp, Dp), f32).at[:H, :D].set(params["W_fc"].T)
    bfc_p = jnp.full((1, Dp), -1e30, f32).at[0, :D].set(params["b_fc"])

    grid_spec = pltpu.PrefetchScalarGridSpec(
        num_scalar_prefetch=0,
        grid=(B,),
        in_specs=[
            pl.BlockSpec((1, Tp, Dp), lambda b: (b, 0, 0)),   # x (per batch)
            pl.BlockSpec((1, 4 * Hp), lambda b: (b, 0)),      # recurrent bias
            pl.BlockSpec((1, Hp), lambda b: (b, 0)),          # cx row
            pl.BlockSpec((Dp, 4 * Hp), lambda b: (0, 0)),     # W_ih^T (resident)
            pl.BlockSpec((Hp, Dp), lambda b: (0, 0)),         # W_fc^T (resident)
            pl.BlockSpec((1, Dp), lambda b: (0, 0)),          # b_fc
        ],
        out_specs=pl.BlockSpec((1, Tp, 1), lambda b: (b, 0, 0)),
    )

    idx = pl.pallas_call(
        functools.partial(_music_lstm_kernel, hp=Hp),
        out_shape=jax.ShapeDtypeStruct((B, Tp, 1), jnp.int32),
        grid_spec=grid_spec,
        compiler_params=pltpu.CompilerParams(
            dimension_semantics=("parallel",)),
    )(Xp, rec_p, cx_p, wih_t_p, wfc_t_p, bfc_p)

    return idx[:, :Tx, 0]                                           # (B, Tx)


def music_inference_pred(X, params):
    """Returns pred of shape (Tx, B, 1, D), int32 one-hot (torch uses int64)."""
    B, Tx, D = X.shape
    idx_bt = music_inference_indices(X, params)                     # (B, Tx)
    oh = jax.nn.one_hot(idx_bt, D, dtype=jnp.int32)                 # (B, Tx, D)
    # torch.stack over timesteps of (B, 1, D) -> (Tx, B, 1, D)
    return jnp.transpose(oh, (1, 0, 2))[:, :, None, :]


def predict_and_sample_forward(X, params):
    D = X.shape[-1]
    pred = music_inference_pred(X, params)               # (Tx, B, 1, D) int32
    indices = jnp.argmax(pred, axis=2)                   # (Tx, B, D): singleton dim -> zeros
    # TODO(synk): reference does `not one_hot(...)` on a tensor, which raises in torch.
    results = jax.nn.one_hot(indices, D, dtype=jnp.int32)   # (Tx, B, D, D)
    return results, indices


def _init_params(key, input_size, hidden_size, batch_size):
    ks = jax.random.split(key, 8)
    s = 1.0 / math.sqrt(hidden_size)
    u = lambda k, shape, scale: jax.random.uniform(k, shape, jnp.float32, -scale, scale)
    return {
        "input_size": input_size,
        "hidden_size": hidden_size,
        "W_ih": u(ks[0], (4 * hidden_size, input_size), s),
        "W_hh": u(ks[1], (4 * hidden_size, hidden_size), s),
        "b_ih": u(ks[2], (4 * hidden_size,), s),
        "b_hh": u(ks[3], (4 * hidden_size,), s),
        "W_fc": u(ks[4], (input_size, hidden_size), s),
        "b_fc": u(ks[5], (input_size,), s),
        "hx": jax.random.normal(ks[6], (batch_size, hidden_size), jnp.float32),
        "cx": jax.random.normal(ks[7], (batch_size, hidden_size), jnp.float32),
    }


def _reference_pred(X, params):
    """Pure-JAX reference of music_inference_model.forward (for verification)."""
    batch, Tx, D = X.shape
    H = params["hidden_size"]
    hx0, cx0 = params["hx"], params["cx"]
    outs = []
    for t in range(Tx):
        x = X[:, t, :]
        gates = (x @ params["W_ih"].T + params["b_ih"]
                 + hx0 @ params["W_hh"].T + params["b_hh"])
        i_g = jax.nn.sigmoid(gates[:, 0 * H:1 * H])
        f_g = jax.nn.sigmoid(gates[:, 1 * H:2 * H])
        g_g = jnp.tanh(gates[:, 2 * H:3 * H])
        o_g = jax.nn.sigmoid(gates[:, 3 * H:4 * H])
        c = f_g * cx0 + i_g * g_g
        h = o_g * jnp.tanh(c)
        logits = h @ params["W_fc"].T + params["b_fc"]
        idx = jnp.argmax(logits, axis=-1)
        oh = jax.nn.one_hot(idx, D, dtype=jnp.int32)
        outs.append(oh[:, None, :])
    return jnp.stack(outs)


if __name__ == "__main__":
    input_size, hidden_size, Tx, batch_size = 90, 64, 100, 1
    key = jax.random.PRNGKey(0)
    kp, kx = jax.random.split(key)
    params = _init_params(kp, input_size, hidden_size, batch_size)
    X = jax.random.normal(kx, (batch_size, Tx, input_size), jnp.float32)

    results, indices = predict_and_sample_forward(X, params)
    results, indices = jax.block_until_ready((results, indices))

    # sanity check against a pure-JAX reference of the forward pass
    pred_ker = jax.block_until_ready(music_inference_pred(X, params))
    pred_ref = _reference_pred(X, params)
    assert pred_ker.shape == (Tx, batch_size, 1, input_size)
    assert results.shape == (Tx, batch_size, input_size, input_size)
    assert indices.shape == (Tx, batch_size, input_size)
    assert bool(jnp.all(pred_ker == pred_ref))

    print("KERNEL_OK")
</pallas_src>

<mosaic_0001>
module attributes {stable_mosaic.version = 11 : i64} {
  func.func @_music_lstm_kernel(%arg0: i32, %arg1: memref<1x104x128xf32, #tpu.memory_space<vmem>>, %arg2: memref<1x512xf32, #tpu.memory_space<vmem>>, %arg3: memref<1x128xf32, #tpu.memory_space<vmem>>, %arg4: memref<128x512xf32, #tpu.memory_space<vmem>>, %arg5: memref<128x128xf32, #tpu.memory_space<vmem>>, %arg6: memref<1x128xf32, #tpu.memory_space<vmem>>, %arg7: memref<1x104x1xi32, #tpu.memory_space<vmem>>) attributes {dimension_semantics = [#tpu.dimension_semantics<parallel>], iteration_bounds = array<i64: 1>, scalar_prefetch = 0 : i64, scratch_operands = 0 : i64, tpu.core_type = #tpu.core_type<tc>, window_params = [{transform_indices = @transform_0, window_bounds = array<i64: 1, 104, 128>}, {transform_indices = @transform_1, window_bounds = array<i64: 1, 512>}, {transform_indices = @transform_2, window_bounds = array<i64: 1, 128>}, {pipeline_mode = #tpu.pipeline_mode<synchronous>, transform_indices = @transform_3, window_bounds = array<i64: 128, 512>}, {pipeline_mode = #tpu.pipeline_mode<synchronous>, transform_indices = @transform_4, window_bounds = array<i64: 128, 128>}, {pipeline_mode = #tpu.pipeline_mode<synchronous>, transform_indices = @transform_5, window_bounds = array<i64: 1, 128>}, {transform_indices = @transform_6, window_bounds = array<i64: 1, 104, 1>}]} {
    %c0 = arith.constant 0 : index
    %c0_0 = arith.constant 0 : index
    %c0_1 = arith.constant 0 : index
    %0 = vector.load %arg1[%c0, %c0_0, %c0_1] : memref<1x104x128xf32, #tpu.memory_space<vmem>>, vector<1x104x128xf32>
    %1 = vector.shape_cast %0 : vector<1x104x128xf32> to vector<104x128xf32>
    %c0_2 = arith.constant 0 : index
    %c0_3 = arith.constant 0 : index
    %2 = vector.load %arg4[%c0_2, %c0_3] : memref<128x512xf32, #tpu.memory_space<vmem>>, vector<128x512xf32>
    %cst = arith.constant dense<0.000000e+00> : vector<104x512xf32>
    %3 = tpu.matmul %1, %2, %cst {dimension_numbers = #tpu.dot_dimension_numbers<[1], [0], [0], [1], [0, 0, 1, 1], [], []>} : vector<104x128xf32>, vector<128x512xf32>, vector<104x512xf32> -> vector<104x512xf32>
    %c0_4 = arith.constant 0 : index
    %c0_5 = arith.constant 0 : index
    %4 = vector.load %arg2[%c0_4, %c0_5] : memref<1x512xf32, #tpu.memory_space<vmem>>, vector<1x512xf32>
    %5 = vector.broadcast %4 : vector<1x512xf32> to vector<104x512xf32>
    %6 = arith.addf %3, %5 : vector<104x512xf32>
    %7 = vector.extract_strided_slice %6 {offsets = [0, 0], sizes = [104, 128], strides = [1, 1]} : vector<104x512xf32> to vector<104x128xf32>
    %8 = arith.negf %7 : vector<104x128xf32>
    %9 = math.exp %8 : vector<104x128xf32>
    %cst_6 = arith.constant 1.000000e+00 : f32
    %10 = vector.broadcast %cst_6 : f32 to vector<104x128xf32>
    %11 = arith.addf %10, %9 : vector<104x128xf32>
    %12 = arith.divf %10, %11 : vector<104x128xf32>
    %13 = vector.extract_strided_slice %6 {offsets = [0, 128], sizes = [104, 128], strides = [1, 1]} : vector<104x512xf32> to vector<104x128xf32>
    %14 = arith.negf %13 : vector<104x128xf32>
    %15 = math.exp %14 : vector<104x128xf32>
    %cst_7 = arith.constant 1.000000e+00 : f32
    %16 = vector.broadcast %cst_7 : f32 to vector<104x128xf32>
    %17 = arith.addf %16, %15 : vector<104x128xf32>
    %18 = arith.divf %16, %17 : vector<104x128xf32>
    %19 = vector.extract_strided_slice %6 {offsets = [0, 256], sizes = [104, 128], strides = [1, 1]} : vector<104x512xf32> to vector<104x128xf32>
    %20 = math.tanh %19 : vector<104x128xf32>
    %21 = vector.extract_strided_slice %6 {offsets = [0, 384], sizes = [104, 128], strides = [1, 1]} : vector<104x512xf32> to vector<104x128xf32>
    %22 = arith.negf %21 : vector<104x128xf32>
    %23 = math.exp %22 : vector<104x128xf32>
    %cst_8 = arith.constant 1.000000e+00 : f32
    %24 = vector.broadcast %cst_8 : f32 to vector<104x128xf32>
    %25 = arith.addf %24, %23 : vector<104x128xf32>
    %26 = arith.divf %24, %25 : vector<104x128xf32>
    %c0_9 = arith.constant 0 : index
    %c0_10 = arith.constant 0 : index
    %27 = vector.load %arg3[%c0_9, %c0_10] : memref<1x128xf32, #tpu.memory_space<vmem>>, vector<1x128xf32>
    %28 = vector.broadcast %27 : vector<1x128xf32> to vector<104x128xf32>
    %29 = arith.mulf %18, %28 : vector<104x128xf32>
    %30 = arith.mulf %12, %20 : vector<104x128xf32>
    %31 = arith.addf %29, %30 : vector<104x128xf32>
    %32 = math.tanh %31 : vector<104x128xf32>
    %33 = arith.mulf %26, %32 : vector<104x128xf32>
    %c0_11 = arith.constant 0 : index
    %c0_12 = arith.constant 0 : index
    %34 = vector.load %arg5[%c0_11, %c0_12] : memref<128x128xf32, #tpu.memory_space<vmem>>, vector<128x128xf32>
    %cst_13 = arith.constant dense<0.000000e+00> : vector<104x128xf32>
    %35 = tpu.matmul %33, %34, %cst_13 {dimension_numbers = #tpu.dot_dimension_numbers<[1], [0], [0], [1], [0, 0, 1, 1], [], []>} : vector<104x128xf32>, vector<128x128xf32>, vector<104x128xf32> -> vector<104x128xf32>
    %c0_14 = arith.constant 0 : index
    %c0_15 = arith.constant 0 : index
    %36 = vector.load %arg6[%c0_14, %c0_15] : memref<1x128xf32, #tpu.memory_space<vmem>>, vector<1x128xf32>
    %37 = vector.broadcast %36 : vector<1x128xf32> to vector<104x128xf32>
    %38 = arith.addf %35, %37 : vector<104x128xf32>
    %39 = tpu.iota {dimensions = array<i32: 1>} : vector<104x128xi32>
    %cst_16 = arith.constant dense<0xFF800000> : vector<104xf32>
    %40 = vector.multi_reduction <maximumf>, %38, %cst_16 [1] : vector<104x128xf32> to vector<104xf32>
    %41 = vector.shape_cast %40 : vector<104xf32> to vector<104x1xf32>
    %42 = vector.broadcast %41 : vector<104x1xf32> to vector<104x128xf32>
    %43 = arith.cmpf oeq, %38, %42 : vector<104x128xf32>
    %c128_i32 = arith.constant 128 : i32
    %44 = vector.broadcast %c128_i32 : i32 to vector<104x128xi32>
    %45 = arith.select %43, %39, %44 : vector<104x128xi1>, vector<104x128xi32>
    %cst_17 = arith.constant dense<2147483647> : vector<104xi32>
    %46 = vector.multi_reduction <minsi>, %45, %cst_17 [1] : vector<104x128xi32> to vector<104xi32>
    %47 = vector.shape_cast %46 : vector<104xi32> to vector<104x1xi32>
    %c0_18 = arith.constant 0 : index
    %c0_19 = arith.constant 0 : index
    %c0_20 = arith.constant 0 : index
    %48 = vector.load %arg7[%c0_18, %c0_19, %c0_20] : memref<1x104x1xi32, #tpu.memory_space<vmem>>, vector<1x104x1xi32>
    %49 = vector.shape_cast %48 : vector<1x104x1xi32> to vector<104x1xi32>
    %50 = vector.shape_cast %47 : vector<104x1xi32> to vector<1x104x1xi32>
    tpu.vector_store %arg7[%c0_18, %c0_19, %c0_20], %50 {strides = array<i32>} : memref<1x104x1xi32, #tpu.memory_space<vmem>>, vector<1x104x1xi32>,
    return
  }
  func.func @transform_0(%arg0: i32) -> (i32, i32, i32) {
    %c0_i32 = arith.constant 0 : i32
    %c0_i32_0 = arith.constant 0 : i32
    %c0_i32_1 = arith.constant 0 : i32
    return %arg0, %c0_i32, %c0_i32_0 : i32, i32, i32
  }
  func.func @transform_1(%arg0: i32) -> (i32, i32) {
    %c0_i32 = arith.constant 0 : i32
    %c0_i32_0 = arith.constant 0 : i32
    return %arg0, %c0_i32 : i32, i32
  }
  func.func @transform_2(%arg0: i32) -> (i32, i32) {
    %c0_i32 = arith.constant 0 : i32
    %c0_i32_0 = arith.constant 0 : i32
    return %arg0, %c0_i32 : i32, i32
  }
  func.func @transform_3(%arg0: i32) -> (i32, i32) {
    %c0_i32 = arith.constant 0 : i32
    %c0_i32_0 = arith.constant 0 : i32
    %c0_i32_1 = arith.constant 0 : i32
    return %c0_i32, %c0_i32_0 : i32, i32
  }
  func.func @transform_4(%arg0: i32) -> (i32, i32) {
    %c0_i32 = arith.constant 0 : i32
    %c0_i32_0 = arith.constant 0 : i32
    %c0_i32_1 = arith.constant 0 : i32
    return %c0_i32, %c0_i32_0 : i32, i32
  }
  func.func @transform_5(%arg0: i32) -> (i32, i32) {
    %c0_i32 = arith.constant 0 : i32
    %c0_i32_0 = arith.constant 0 : i32
    %c0_i32_1 = arith.constant 0 : i32
    return %c0_i32, %c0_i32_0 : i32, i32
  }
  func.func @transform_6(%arg0: i32) -> (i32, i32, i32) {
    %c0_i32 = arith.constant 0 : i32
    %c0_i32_0 = arith.constant 0 : i32
    %c0_i32_1 = arith.constant 0 : i32
    return %arg0, %c0_i32, %c0_i32_0 : i32, i32, i32
  }
}

</mosaic_0001>

<llo_original>
// kernel: tpu_custom_call.1
$region0: #{tpu_custom_call.1}
  #allocation0 [shape = 'u32[]', space=smem, size = 0x4, offset = 0x4, fixed_abs, tag = 'smem constant byte address 0x4 - core index']
  #allocation1 [shape = 'u32[144,128]{1,0:T(1,128)}', space=vmem, size = 0x12000, scoped, tag = 'internal scratch']
  %s0 = inlined_call_operand.hbm [shape: f32[1,104,128], index: 0, kind: input, shape index: {}]
  %s1 = inlined_call_operand.hbm [shape: f32[1,512], index: 1, kind: input, shape index: {}]
  %s2 = inlined_call_operand.vmem [shape: f32[1,128], index: 2, kind: input, shape index: {}]
  %s3 = inlined_call_operand.hbm [shape: f32[128,512], index: 3, kind: input, shape index: {}]
  %s4 = inlined_call_operand.hbm [shape: f32[128,128], index: 4, kind: input, shape index: {}]
  %s5 = inlined_call_operand.vmem [shape: f32[1,128], index: 5, kind: input, shape index: {}]
  %s6 = inlined_call_operand.vmem [shape: s32[1,104,1], index: 6, kind: output, shape index: {}]
  %s7 = sld [smem:[#allocation0]]
  $region50: #{tpu_custom_call.1} parent=0
    _
  %s9 = ssub.s32 1, %s7
  %s10 = scalar_select 0, %s9, %s7
  $region1: #{tpu_custom_call.1} parent=0
    #allocation2 [shape = 'u8[53248]{0}', space=vmem, size = 0xd000, scoped, tag = 'input window, operand 0, single buffered']
    #allocation3 [shape = 's32[1]{0}', space=sflag, size = 0x4, scoped, tag = 'scoped memory for tpu_custom_call.1']
    #allocation4 [shape = 'u8[2048]{0}', space=vmem, size = 0x800, scoped, tag = 'input window, operand 1, single buffered']
    #allocation5 [shape = 's32[1]{0}', space=sflag, size = 0x4, scoped, tag = 'scoped memory for tpu_custom_call.1']
    #allocation6 [shape = 'u8[262144]{0}', space=vmem, size = 0x40000, scoped, tag = 'input window, operand 3, single buffered']
    #allocation7 [shape = 'u8[65536]{0}', space=vmem, size = 0x10000, scoped, tag = 'input window, operand 4, single buffered']
    #allocation8 [shape = 's32[1]{0}', space=sflag, size = 0x4, scoped, tag = 'scoped memory for tpu_custom_call.1']
    %11 = vsyncpa [#allocation3], 0
    %12 = vsyncpa [#allocation5], 0
    %13 = vsyncpa [#allocation8], 0
    // Predicated region
    $region2: #{tpu_custom_call.1} parent=1 // pred_check
      _
    $region3: #{tpu_custom_call.1} parent=1 // pred_check_branch
      %15 = sbr.rel (0) target = $region5
    $region4: #{tpu_custom_call.1} parent=1 // pred_region
      %s17 = ssub.s32 1664, 1664
      %18 = vsyncadd [#allocation3], %s17
      %s19 = sshll.u32 [#allocation2], 4
      %s20 = int_to_ptr.vmem [resolvable:$true] %s19
      %25 = dma.hbm_to_vmem [thread:$0]  %s0, 1664, %s20, [#allocation3], 128, 128, 8
    $region5: #{tpu_custom_call.1} parent=1 // pred_fallthru
      _
    // Predicated region
    $region6: #{tpu_custom_call.1} parent=1 // pred_check
      _
    $region7: #{tpu_custom_call.1} parent=1 // pred_check_branch
      %27 = sbr.rel (0) target = $region9
    $region8: #{tpu_custom_call.1} parent=1 // pred_region
      %s29 = ssub.s32 64, 64
      %30 = vsyncadd [#allocation5], %s29
      %s32 = sshll.u32 [#allocation4], 4
      %s33 = int_to_ptr.vmem [resolvable:$true] %s32
      %35 = dma.hbm_to_vmem [thread:$0]  %s1, 64, %s33, [#allocation5]
    $region9: #{tpu_custom_call.1} parent=1 // pred_fallthru
      _
    // Predicated region
    $region10: #{tpu_custom_call.1} parent=1 // pred_check
      _
    $region11: #{tpu_custom_call.1} parent=1 // pred_check_branch
      %37 = sbr.rel (0) target = $region13
    $region12: #{tpu_custom_call.1} parent=1 // pred_region
      _
    $region13: #{tpu_custom_call.1} parent=1 // pred_fallthru
      _
    // Predicated region
    $region14: #{tpu_custom_call.1} parent=1 // pred_check
      _
    $region15: #{tpu_custom_call.1} parent=1 // pred_check_branch
      %39 = sbr.rel (0) target = $region17
    $region16: #{tpu_custom_call.1} parent=1 // pred_region
      %s41 = ssub.s32 8192, 8192
      %42 = vsyncadd [#allocation5], %s41
      %s43 = sshll.u32 [#allocation6], 4
      %s44 = int_to_ptr.vmem [resolvable:$true] %s43
      %49 = dma.hbm_to_vmem [thread:$0]  %s3, 8192, %s44, [#allocation5], 512, 512, 32
    $region17: #{tpu_custom_call.1} parent=1 // pred_fallthru
      _
    // Predicated region
    $region18: #{tpu_custom_call.1} parent=1 // pred_check
      _
    $region19: #{tpu_custom_call.1} parent=1 // pred_check_branch
      %51 = sbr.rel (0) target = $region21
    $region20: #{tpu_custom_call.1} parent=1 // pred_region
      %s53 = ssub.s32 2048, 2048
      %54 = vsyncadd [#allocation8], %s53
      %s55 = sshll.u32 [#allocation7], 4
      %s56 = int_to_ptr.vmem [resolvable:$true] %s55
      %61 = dma.hbm_to_vmem [thread:$0]  %s4, 2048, %s56, [#allocation8], 128, 128, 8
    $region21: #{tpu_custom_call.1} parent=1 // pred_fallthru
      _
    // Predicated region
    $region22: #{tpu_custom_call.1} parent=1 // pred_check
      _
    $region23: #{tpu_custom_call.1} parent=1 // pred_check_branch
      %63 = sbr.rel (0) target = $region25
    $region24: #{tpu_custom_call.1} parent=1 // pred_region
      _
    $region25: #{tpu_custom_call.1} parent=1 // pred_fallthru
      _
    // Predicated region
    $region26: #{tpu_custom_call.1} parent=1 // pred_check
      _
    $region27: #{tpu_custom_call.1} parent=1 // pred_check_branch
      %65 = sbr.rel (0) target = $region29
    $region28: #{tpu_custom_call.1} parent=1 // pred_region
      %66 = dma.done [#allocation3], 1664
    $region29: #{tpu_custom_call.1} parent=1 // pred_fallthru
      _
    // Predicated region
    $region30: #{tpu_custom_call.1} parent=1 // pred_check
      _
    $region31: #{tpu_custom_call.1} parent=1 // pred_check_branch
      %68 = sbr.rel (0) target = $region33
    $region32: #{tpu_custom_call.1} parent=1 // pred_region
      %69 = dma.done [#allocation5], 64
    $region33: #{tpu_custom_call.1} parent=1 // pred_fallthru
      _
    // Predicated region
    $region34: #{tpu_custom_call.1} parent=1 // pred_check
      _
    $region35: #{tpu_custom_call.1} parent=1 // pred_check_branch
      %71 = sbr.rel (0) target = $region37
    $region36: #{tpu_custom_call.1} parent=1 // pred_region
      %72 = dma.done [#allocation5], 8192
    $region37: #{tpu_custom_call.1} parent=1 // pred_fallthru
      _
    // Predicated region
    $region38: #{tpu_custom_call.1} parent=1 // pred_check
      _
    $region39: #{tpu_custom_call.1} parent=1 // pred_check_branch
      %74 = sbr.rel (0) target = $region41
    $region40: #{tpu_custom_call.1} parent=1 // pred_region
      %75 = dma.done [#allocation8], 2048
    $region41: #{tpu_custom_call.1} parent=1 // pred_fallthru
      _
    %v76 = vld [vmem:[#allocation2] sm:$0xff]
    %v77 = vld [vmem:[#allocation2 + $0x8] sm:$0xff]
    %v78 = vld [vmem:[#allocation2 + $0x10] sm:$0xff]
    %v79 = vld [vmem:[#allocation2 + $0x18] sm:$0xff]
    %v80 = vld [vmem:[#allocation2 + $0x20] sm:$0xff]
    %v81 = vld [vmem:[#allocation2 + $0x28] sm:$0xff]
    %v82 = vld [vmem:[#allocation2 + $0x30] sm:$0xff]
    %v83 = vld [vmem:[#allocation2 + $0x38] sm:$0xff]
    %v84 = vld [vmem:[#allocation2 + $0x40] sm:$0xff]
    %v85 = vld [vmem:[#allocation2 + $0x48] sm:$0xff]
    %v86 = vld [vmem:[#allocation2 + $0x50] sm:$0xff]
    %v87 = vld [vmem:[#allocation2 + $0x58] sm:$0xff]
    %v88 = vld [vmem:[#allocation2 + $0x60] sm:$0xff]
    %v89 = vld [vmem:[#allocation6] sm:$0xff]
    %v90 = vld [vmem:[#allocation6 + $0x8] sm:$0xff]
    %v91 = vld [vmem:[#allocation6 + $0x10] sm:$0xff]
    %v92 = vld [vmem:[#allocation6 + $0x18] sm:$0xff]
    %v93 = vld [vmem:[#allocation6 + $0x20] sm:$0xff]
    %v94 = vld [vmem:[#allocation6 + $0x28] sm:$0xff]
    %v95 = vld [vmem:[#allocation6 + $0x30] sm:$0xff]
    %v96 = vld [vmem:[#allocation6 + $0x38] sm:$0xff]
    %v97 = vld [vmem:[#allocation6 + $0x40] sm:$0xff]
    %v98 = vld [vmem:[#allocation6 + $0x48] sm:$0xff]
    %v99 = vld [vmem:[#allocation6 + $0x50] sm:$0xff]
    %v100 = vld [vmem:[#allocation6 + $0x58] sm:$0xff]
    %v101 = vld [vmem:[#allocation6 + $0x60] sm:$0xff]
    %v102 = vld [vmem:[#allocation6 + $0x68] sm:$0xff]
    %v103 = vld [vmem:[#allocation6 + $0x70] sm:$0xff]
    %v104 = vld [vmem:[#allocation6 + $0x78] sm:$0xff]
    %v105 = vld [vmem:[#allocation6 + $0x80] sm:$0xff]
    %v106 = vld [vmem:[#allocation6 + $0x88] sm:$0xff]
    %v107 = vld [vmem:[#allocation6 + $0x90] sm:$0xff]
    %v108 = vld [vmem:[#allocation6 + $0x98] sm:$0xff]
    %v109 = vld [vmem:[#allocation6 + $0xa0] sm:$0xff]
    %v110 = vld [vmem:[#allocation6 + $0xa8] sm:$0xff]
    %v111 = vld [vmem:[#allocation6 + $0xb0] sm:$0xff]
    %v112 = vld [vmem:[#allocation6 + $0xb8] sm:$0xff]
    %v113 = vld [vmem:[#allocation6 + $0xc0] sm:$0xff]
    %v114 = vld [vmem:[#allocation6 + $0xc8] sm:$0xff]
    %v115 = vld [vmem:[#allocation6 + $0xd0] sm:$0xff]
    %v116 = vld [vmem:[#allocation6 + $0xd8] sm:$0xff]
    %v117 = vld [vmem:[#allocation6 + $0xe0] sm:$0xff]
    %v118 = vld [vmem:[#allocation6 + $0xe8] sm:$0xff]
    %v119 = vld [vmem:[#allocation6 + $0xf0] sm:$0xff]
    %v120 = vld [vmem:[#allocation6 + $0xf8] sm:$0xff]
    %v121 = vld [vmem:[#allocation6 + $0x100] sm:$0xff]
    %v122 = vld [vmem:[#allocation6 + $0x108] sm:$0xff]
    %v123 = vld [vmem:[#allocation6 + $0x110] sm:$0xff]
    %v124 = vld [vmem:[#allocation6 + $0x118] sm:$0xff]
    %v125 = vld [vmem:[#allocation6 + $0x120] sm:$0xff]
    %v126 = vld [vmem:[#allocation6 + $0x128] sm:$0xff]
    %v127 = vld [vmem:[#allocation6 + $0x130] sm:$0xff]
    %v128 = vld [vmem:[#allocation6 + $0x138] sm:$0xff]
    %v129 = vld [vmem:[#allocation6 + $0x140] sm:$0xff]
    %v130 = vld [vmem:[#allocation6 + $0x148] sm:$0xff]
    %v131 = vld [vmem:[#allocation6 + $0x150] sm:$0xff]
    %v132 = vld [vmem:[#allocation6 + $0x158] sm:$0xff]
    %v133 = vld [vmem:[#allocation6 + $0x160] sm:$0xff]
    %v134 = vld [vmem:[#allocation6 + $0x168] sm:$0xff]
    %v135 = vld [vmem:[#allocation6 + $0x170] sm:$0xff]
    %v136 = vld [vmem:[#allocation6 + $0x178] sm:$0xff]
    %v137 = vld [vmem:[#allocation6 + $0x180] sm:$0xff]
    %v138 = vld [vmem:[#allocation6 + $0x188] sm:$0xff]
    %v139 = vld [vmem:[#allocation6 + $0x190] sm:$0xff]
    %v140 = vld [vmem:[#allocation6 + $0x198] sm:$0xff]
    %v141 = vld [vmem:[#allocation6 + $0x1a0] sm:$0xff]
    %v142 = vld [vmem:[#allocation6 + $0x1a8] sm:$0xff]
    %v143 = vld [vmem:[#allocation6 + $0x1b0] sm:$0xff]
    %v144 = vld [vmem:[#allocation6 + $0x1b8] sm:$0xff]
    %v145 = vld [vmem:[#allocation6 + $0x1c0] sm:$0xff]
    %v146 = vld [vmem:[#allocation6 + $0x1c8] sm:$0xff]
    %v147 = vld [vmem:[#allocation6 + $0x1d0] sm:$0xff]
    %v148 = vld [vmem:[#allocation6 + $0x1d8] sm:$0xff]
    %v149 = vld [vmem:[#allocation6 + $0x1e0] sm:$0xff]
    %v150 = vld [vmem:[#allocation6 + $0x1e8] sm:$0xff]
    %v151 = vld [vmem:[#allocation6 + $0x1f0] sm:$0xff]
    %v152 = vld [vmem:[#allocation6 + $0x1f8] sm:$0xff]
    %v153 = vld [vmem:[#allocation4] sm:$0xf]
    %v155 = vlaneseq
    %v156 = vshrl.u32 %v155, 7
    %v157 = vsub.s32 0, %v156
    %v158 = vrot.slane %v153, %v157
    %v159 = vlaneseq
    %v160 = vshrl.u32 %v159, 7
    %v161 = vsub.s32 1, %v160
    %v162 = vrot.slane %v153, %v161
    %v163 = vlaneseq
    %v164 = vshrl.u32 %v163, 7
    %v165 = vsub.s32 2, %v164
    %v166 = vrot.slane %v153, %v165
    %v167 = vlaneseq
    %v168 = vshrl.u32 %v167, 7
    %v169 = vsub.s32 3, %v168
    %v170 = vrot.slane %v153, %v169
    %175 = vmatprep.subr.mxu0 %v150
    %176 = vmatpush1.msra.mxu0 %v149
    %177 = vmatprep.subr.mxu0 %v146
    %178 = vmatpush1.msra.mxu0 %v145
    %179 = vmatprep.subr.mxu0 %v142
    %180 = vmatpush1.msra.mxu0 %v141
    %181 = vmatprep.subr.mxu0 %v138
    %182 = vmatpush1.msra.mxu0 %v137
    %183 = vmatprep.subr.mxu0 %v134
    %184 = vmatpush1.msra.mxu0 %v133
    %185 = vmatprep.subr.mxu0 %v130
    %186 = vmatpush1.msra.mxu0 %v129
    %187 = vmatprep.subr.mxu0 %v126
    %188 = vmatpush1.msra.mxu0 %v125
    %189 = vmatprep.subr.mxu0 %v122
    %190 = vmatpush1.msra.mxu0 %v121
    %191 = vmatprep.subr.mxu0 %v118
    %192 = vmatpush1.msra.mxu0 %v117
    %193 = vmatprep.subr.mxu0 %v114
    %194 = vmatpush1.msra.mxu0 %v113
    %195 = vmatprep.subr.mxu0 %v110
    %196 = vmatpush1.msra.mxu0 %v109
    %197 = vmatprep.subr.mxu0 %v106
    %198 = vmatpush1.msra.mxu0 %v105
    %199 = vmatprep.subr.mxu0 %v102
    %200 = vmatpush1.msra.mxu0 %v101
    %201 = vmatprep.subr.mxu0 %v98
    %202 = vmatpush1.msra.mxu0 %v97
    %203 = vmatprep.subr.mxu0 %v94
    %204 = vmatpush1.msra.mxu0 %v93
    %205 = vmatprep.subr.mxu0 %v90
    %206 = vmatpush1.msra.mxu0 %v89
    %207 = vmatprep.subr.mxu0 0.0
    %208 = vmatpush2.msra.mxu0 0.0
    %209 = vmatprep.subr.mxu0 0.0
    %210 = vmatpush2.msra.mxu0 0.0
    %211 = vmatprep.subr.mxu0 0.0
    %212 = vmatpush2.msra.mxu0 0.0
    %213 = vmatprep.subr.mxu0 0.0
    %214 = vmatpush2.msra.mxu0 0.0
    %215 = vmatprep.subr.mxu0 0.0
    %216 = vmatpush2.msra.mxu0 0.0
    %217 = vmatprep.subr.mxu0 0.0
    %218 = vmatpush2.msra.mxu0 0.0
    %219 = vmatprep.subr.mxu0 0.0
    %220 = vmatpush2.msra.mxu0 0.0
    %221 = vmatprep.subr.mxu0 0.0
    %222 = vmatpush2.msra.mxu0 0.0
    %223 = vmatprep.subr.mxu0 0.0
    %224 = vmatpush2.msra.mxu0 0.0
    %225 = vmatprep.subr.mxu0 0.0
    %226 = vmatpush2.msra.mxu0 0.0
    %227 = vmatprep.subr.mxu0 0.0
    %228 = vmatpush2.msra.mxu0 0.0
    %229 = vmatprep.subr.mxu0 0.0
    %230 = vmatpush2.msra.mxu0 0.0
    %231 = vmatprep.subr.mxu0 0.0
    %232 = vmatpush2.msra.mxu0 0.0
    %233 = vmatprep.subr.mxu0 0.0
    %234 = vmatpush2.msra.mxu0 0.0
    %235 = vmatprep.subr.mxu0 0.0
    %236 = vmatpush2.msra.mxu0 0.0
    %237 = vmatprep.subr.mxu0 0.0
    %238 = vmatpush2.msra.mxu0 0.0
    %239 = vmatprep.mubr.f32.mxu0 0.0
    %240 = vmatmul.mubr.f32.gmra.mxu0 %v76
    %v241 = vpop.f32.mrf.mxu0
    %v242 = vadd.f32 %v158, %v241
    %v243 = vpop.f32.mrf.mxu0
    %v244 = vadd.f32 %v162, %v243
    %245 = vmatprep.mubr.f32.mxu0 0.0
    %246 = vmatmul.mubr.f32.gmra.mxu0 %v77
    %v247 = vpop.f32.mrf.mxu0
    %v248 = vadd.f32 %v158, %v247
    %v249 = vpop.f32.mrf.mxu0
    %v250 = vadd.f32 %v162, %v249
    %251 = vmatprep.mubr.f32.mxu0 0.0
    %252 = vmatmul.mubr.f32.gmra.mxu0 %v78
    %v253 = vpop.f32.mrf.mxu0
    %v254 = vadd.f32 %v158, %v253
    %v255 = vpop.f32.mrf.mxu0
    %v256 = vadd.f32 %v162, %v255
    %257 = vmatprep.mubr.f32.mxu0 0.0
    %258 = vmatmul.mubr.f32.gmra.mxu0 %v79
    %v259 = vpop.f32.mrf.mxu0
    %v260 = vadd.f32 %v158, %v259
    %v261 = vpop.f32.mrf.mxu0
    %v262 = vadd.f32 %v162, %v261
    %263 = vmatprep.mubr.f32.mxu0 0.0
    %264 = vmatmul.mubr.f32.gmra.mxu0 %v80
    %v265 = vpop.f32.mrf.mxu0
    %v266 = vadd.f32 %v158, %v265
    %v267 = vpop.f32.mrf.mxu0
    %v268 = vadd.f32 %v162, %v267
    %269 = vmatprep.mubr.f32.mxu0 0.0
    %270 = vmatmul.mubr.f32.gmra.mxu0 %v81
    %v271 = vpop.f32.mrf.mxu0
    %v272 = vadd.f32 %v158, %v271
    %v273 = vpop.f32.mrf.mxu0
    %v274 = vadd.f32 %v162, %v273
    %275 = vmatprep.mubr.f32.mxu0 0.0
    %276 = vmatmul.mubr.f32.gmra.mxu0 %v82
    %v277 = vpop.f32.mrf.mxu0
    %v278 = vadd.f32 %v158, %v277
    %v279 = vpop.f32.mrf.mxu0
    %v280 = vadd.f32 %v162, %v279
    %281 = vmatprep.mubr.f32.mxu0 0.0
    %282 = vmatmul.mubr.f32.gmra.mxu0 %v83
    %v283 = vpop.f32.mrf.mxu0
    %v284 = vadd.f32 %v158, %v283
    %v285 = vpop.f32.mrf.mxu0
    %v286 = vadd.f32 %v162, %v285
    %287 = vmatprep.mubr.f32.mxu0 0.0
    %288 = vmatmul.mubr.f32.gmra.mxu0 %v84
    %v289 = vpop.f32.mrf.mxu0
    %v290 = vadd.f32 %v158, %v289
    %v291 = vpop.f32.mrf.mxu0
    %v292 = vadd.f32 %v162, %v291
    %293 = vmatprep.mubr.f32.mxu0 0.0
    %294 = vmatmul.mubr.f32.gmra.mxu0 %v85
    %v295 = vpop.f32.mrf.mxu0
    %v296 = vadd.f32 %v158, %v295
    %v297 = vpop.f32.mrf.mxu0
    %v298 = vadd.f32 %v162, %v297
    %299 = vmatprep.mubr.f32.mxu0 0.0
    %300 = vmatmul.mubr.f32.gmra.mxu0 %v86
    %v301 = vpop.f32.mrf.mxu0
    %v302 = vadd.f32 %v158, %v301
    %v303 = vpop.f32.mrf.mxu0
    %v304 = vadd.f32 %v162, %v303
    %305 = vmatprep.mubr.f32.mxu0 0.0
    %306 = vmatmul.mubr.f32.gmra.mxu0 %v87
    %v307 = vpop.f32.mrf.mxu0
    %v308 = vadd.f32 %v158, %v307
    %v309 = vpop.f32.mrf.mxu0
    %v310 = vadd.f32 %v162, %v309
    %311 = vmatprep.mubr.f32.mxu0 0.0
    %312 = vmatmul.mubr.f32.gmra.mxu0 %v88
    %v313 = vpop.f32.mrf.mxu0
    %v314 = vadd.f32 %v158, %v313
    %v315 = vpop.f32.mrf.mxu0
    %v316 = vadd.f32 %v162, %v315
    %317 = vdwg.mxu0
    %318 = vmatprep.subr.mxu0 %v152
    %319 = vmatpush1.msra.mxu0 %v151
    %320 = vmatprep.subr.mxu0 %v148
    %321 = vmatpush1.msra.mxu0 %v147
    %322 = vmatprep.subr.mxu0 %v144
    %323 = vmatpush1.msra.mxu0 %v143
    %324 = vmatprep.subr.mxu0 %v140
    %325 = vmatpush1.msra.mxu0 %v139
    %326 = vmatprep.subr.mxu0 %v136
    %327 = vmatpush1.msra.mxu0 %v135
    %328 = vmatprep.subr.mxu0 %v132
    %329 = vmatpush1.msra.mxu0 %v131
    %330 = vmatprep.subr.mxu0 %v128
    %331 = vmatpush1.msra.mxu0 %v127
    %332 = vmatprep.subr.mxu0 %v124
    %333 = vmatpush1.msra.mxu0 %v123
    %334 = vmatprep.subr.mxu0 %v120
    %335 = vmatpush1.msra.mxu0 %v119
    %336 = vmatprep.subr.mxu0 %v116
    %337 = vmatpush1.msra.mxu0 %v115
    %338 = vmatprep.subr.mxu0 %v112
    %339 = vmatpush1.msra.mxu0 %v111
    %340 = vmatprep.subr.mxu0 %v108
    %341 = vmatpush1.msra.mxu0 %v107
    %342 = vmatprep.subr.mxu0 %v104
    %343 = vmatpush1.msra.mxu0 %v103
    %344 = vmatprep.subr.mxu0 %v100
    %345 = vmatpush1.msra.mxu0 %v99
    %346 = vmatprep.subr.mxu0 %v96
    %347 = vmatpush1.msra.mxu0 %v95
    %348 = vmatprep.subr.mxu0 %v92
    %349 = vmatpush1.msra.mxu0 %v91
    %350 = vmatprep.subr.mxu0 0.0
    %351 = vmatpush2.msra.mxu0 0.0
    %352 = vmatprep.subr.mxu0 0.0
    %353 = vmatpush2.msra.mxu0 0.0
    %354 = vmatprep.subr.mxu0 0.0
    %355 = vmatpush2.msra.mxu0 0.0
    %356 = vmatprep.subr.mxu0 0.0
    %357 = vmatpush2.msra.mxu0 0.0
    %358 = vmatprep.subr.mxu0 0.0
    %359 = vmatpush2.msra.mxu0 0.0
    %360 = vmatprep.subr.mxu0 0.0
    %361 = vmatpush2.msra.mxu0 0.0
    %362 = vmatprep.subr.mxu0 0.0
    %363 = vmatpush2.msra.mxu0 0.0
    %364 = vmatprep.subr.mxu0 0.0
    %365 = vmatpush2.msra.mxu0 0.0
    %366 = vmatprep.subr.mxu0 0.0
    %367 = vmatpush2.msra.mxu0 0.0
    %368 = vmatprep.subr.mxu0 0.0
    %369 = vmatpush2.msra.mxu0 0.0
    %370 = vmatprep.subr.mxu0 0.0
    %371 = vmatpush2.msra.mxu0 0.0
    %372 = vmatprep.subr.mxu0 0.0
    %373 = vmatpush2.msra.mxu0 0.0
    %374 = vmatprep.subr.mxu0 0.0
    %375 = vmatpush2.msra.mxu0 0.0
    %376 = vmatprep.subr.mxu0 0.0
    %377 = vmatpush2.msra.mxu0 0.0
    %378 = vmatprep.subr.mxu0 0.0
    %379 = vmatpush2.msra.mxu0 0.0
    %380 = vmatprep.subr.mxu0 0.0
    %381 = vmatpush2.msra.mxu0 0.0
    %382 = vmatprep.mubr.f32.mxu0 0.0
    %383 = vmatmul.mubr.f32.gmra.mxu0 %v76
    %v384 = vpop.f32.mrf.mxu0
    %v385 = vadd.f32 %v166, %v384
    %v386 = vpop.f32.mrf.mxu0
    %v387 = vadd.f32 %v170, %v386
    %388 = vmatprep.mubr.f32.mxu0 0.0
    %389 = vmatmul.mubr.f32.gmra.mxu0 %v77
    %v390 = vpop.f32.mrf.mxu0
    %v391 = vadd.f32 %v166, %v390
    %v392 = vpop.f32.mrf.mxu0
    %v393 = vadd.f32 %v170, %v392
    %394 = vmatprep.mubr.f32.mxu0 0.0
    %395 = vmatmul.mubr.f32.gmra.mxu0 %v78
    %v396 = vpop.f32.mrf.mxu0
    %v397 = vadd.f32 %v166, %v396
    %v398 = vpop.f32.mrf.mxu0
    %v399 = vadd.f32 %v170, %v398
    %400 = vmatprep.mubr.f32.mxu0 0.0
    %401 = vmatmul.mubr.f32.gmra.mxu0 %v79
    %v402 = vpop.f32.mrf.mxu0
    %v403 = vadd.f32 %v166, %v402
    %v404 = vpop.f32.mrf.mxu0
    %v405 = vadd.f32 %v170, %v404
    %406 = vmatprep.mubr.f32.mxu0 0.0
    %407 = vmatmul.mubr.f32.gmra.mxu0 %v80
    %v408 = vpop.f32.mrf.mxu0
    %v409 = vadd.f32 %v166, %v408
    %v410 = vpop.f32.mrf.mxu0
    %v411 = vadd.f32 %v170, %v410
    %412 = vmatprep.mubr.f32.mxu0 0.0
    %413 = vmatmul.mubr.f32.gmra.mxu0 %v81
    %v414 = vpop.f32.mrf.mxu0
    %v415 = vadd.f32 %v166, %v414
    %v416 = vpop.f32.mrf.mxu0
    %v417 = vadd.f32 %v170, %v416
    %418 = vmatprep.mubr.f32.mxu0 0.0
    %419 = vmatmul.mubr.f32.gmra.mxu0 %v82
    %v420 = vpop.f32.mrf.mxu0
    %v421 = vadd.f32 %v166, %v420
    %v422 = vpop.f32.mrf.mxu0
    %v423 = vadd.f32 %v170, %v422
    %424 = vmatprep.mubr.f32.mxu0 0.0
    %425 = vmatmul.mubr.f32.gmra.mxu0 %v83
    %v426 = vpop.f32.mrf.mxu0
    %v427 = vadd.f32 %v166, %v426
    %v428 = vpop.f32.mrf.mxu0
    %v429 = vadd.f32 %v170, %v428
    %430 = vmatprep.mubr.f32.mxu0 0.0
    %431 = vmatmul.mubr.f32.gmra.mxu0 %v84
    %v432 = vpop.f32.mrf.mxu0
    %v433 = vadd.f32 %v166, %v432
    %v434 = vpop.f32.mrf.mxu0
    %v435 = vadd.f32 %v170, %v434
    %436 = vmatprep.mubr.f32.mxu0 0.0
    %437 = vmatmul.mubr.f32.gmra.mxu0 %v85
    %v438 = vpop.f32.mrf.mxu0
    %v439 = vadd.f32 %v166, %v438
    %v440 = vpop.f32.mrf.mxu0
    %v441 = vadd.f32 %v170, %v440
    %442 = vmatprep.mubr.f32.mxu0 0.0
    %443 = vmatmul.mubr.f32.gmra.mxu0 %v86
    %v444 = vpop.f32.mrf.mxu0
    %v445 = vadd.f32 %v166, %v444
    %v446 = vpop.f32.mrf.mxu0
    %v447 = vadd.f32 %v170, %v446
    %448 = vmatprep.mubr.f32.mxu0 0.0
    %449 = vmatmul.mubr.f32.gmra.mxu0 %v87
    %v450 = vpop.f32.mrf.mxu0
    %v451 = vadd.f32 %v166, %v450
    %v452 = vpop.f32.mrf.mxu0
    %v453 = vadd.f32 %v170, %v452
    %454 = vmatprep.mubr.f32.mxu0 0.0
    %455 = vmatmul.mubr.f32.gmra.mxu0 %v88
    %v456 = vpop.f32.mrf.mxu0
    %v457 = vadd.f32 %v166, %v456
    %v458 = vpop.f32.mrf.mxu0
    %v459 = vadd.f32 %v170, %v458
    %460 = vdwg.mxu0
    %v461 = vxor.u32 %v242, 2147483648
    %v462 = vxor.u32 %v248, 2147483648
    %v463 = vxor.u32 %v254, 2147483648
    %v464 = vxor.u32 %v260, 2147483648
    %v465 = vxor.u32 %v266, 2147483648
    %v466 = vxor.u32 %v272, 2147483648
    %v467 = vxor.u32 %v278, 2147483648
    %v468 = vxor.u32 %v284, 2147483648
    %v469 = vxor.u32 %v290, 2147483648
    %v470 = vxor.u32 %v296, 2147483648
    %v471 = vxor.u32 %v302, 2147483648
    %v472 = vxor.u32 %v308, 2147483648
    %v473 = vxor.u32 %v314, 2147483648
    %v474 = vmul.f32 %v461, 1.442695
    %v475 = vpow.pop %v474
    %v476 = vmul.f32 %v462, 1.442695
    %v477 = vpow.pop %v476
    %v478 = vmul.f32 %v463, 1.442695
    %v479 = vpow.pop %v478
    %v480 = vmul.f32 %v464, 1.442695
    %v481 = vpow.pop %v480
    %v482 = vmul.f32 %v465, 1.442695
    %v483 = vpow.pop %v482
    %v484 = vmul.f32 %v466, 1.442695
    %v485 = vpow.pop %v484
    %v486 = vmul.f32 %v467, 1.442695
    %v487 = vpow.pop %v486
    %v488 = vmul.f32 %v468, 1.442695
    %v489 = vpow.pop %v488
    %v490 = vmul.f32 %v469, 1.442695
    %v491 = vpow.pop %v490
    %v492 = vmul.f32 %v470, 1.442695
    %v493 = vpow.pop %v492
    %v494 = vmul.f32 %v471, 1.442695
    %v495 = vpow.pop %v494
    %v496 = vmul.f32 %v472, 1.442695
    %v497 = vpow.pop %v496
    %v498 = vmul.f32 %v473, 1.442695
    %v499 = vpow.pop %v498
    %v500 = vadd.f32 %v475, 1.0
    %v501 = vadd.f32 %v477, 1.0
    %v502 = vadd.f32 %v479, 1.0
    %v503 = vadd.f32 %v481, 1.0
    %v504 = vadd.f32 %v483, 1.0
    %v505 = vadd.f32 %v485, 1.0
    %v506 = vadd.f32 %v487, 1.0
    %v507 = vadd.f32 %v489, 1.0
    %v508 = vadd.f32 %v491, 1.0
    %v509 = vadd.f32 %v493, 1.0
    %v510 = vadd.f32 %v495, 1.0
    %v511 = vadd.f32 %v497, 1.0
    %v512 = vadd.f32 %v499, 1.0
    %v513 = vrcp.pop %v500
    %v514 = vmul.f32 1.0, %v513
    %v515 = vrcp.pop %v501
    %v516 = vmul.f32 1.0, %v515
    %v517 = vrcp.pop %v502
    %v518 = vmul.f32 1.0, %v517
    %v519 = vrcp.pop %v503
    %v520 = vmul.f32 1.0, %v519
    %v521 = vrcp.pop %v504
    %v522 = vmul.f32 1.0, %v521
    %v523 = vrcp.pop %v505
    %v524 = vmul.f32 1.0, %v523
    %v525 = vrcp.pop %v506
    %v526 = vmul.f32 1.0, %v525
    %v527 = vrcp.pop %v507
    %v528 = vmul.f32 1.0, %v527
    %v529 = vrcp.pop %v508
    %v530 = vmul.f32 1.0, %v529
    %v531 = vrcp.pop %v509
    %v532 = vmul.f32 1.0, %v531
    %v533 = vrcp.pop %v510
    %v534 = vmul.f32 1.0, %v533
    %v535 = vrcp.pop %v511
    %v536 = vmul.f32 1.0, %v535
    %v537 = vrcp.pop %v512
    %v538 = vmul.f32 1.0, %v537
    %v539 = vxor.u32 %v244, 2147483648
    %v540 = vxor.u32 %v250, 2147483648
    %v541 = vxor.u32 %v256, 2147483648
    %v542 = vxor.u32 %v262, 2147483648
    %v543 = vxor.u32 %v268, 2147483648
    %v544 = vxor.u32 %v274, 2147483648
    %v545 = vxor.u32 %v280, 2147483648
    %v546 = vxor.u32 %v286, 2147483648
    %v547 = vxor.u32 %v292, 2147483648
    %v548 = vxor.u32 %v298, 2147483648
    %v549 = vxor.u32 %v304, 2147483648
    %v550 = vxor.u32 %v310, 2147483648
    %v551 = vxor.u32 %v316, 2147483648
    %v552 = vmul.f32 %v539, 1.442695
    %v553 = vpow.pop %v552
    %v554 = vmul.f32 %v540, 1.442695
    %v555 = vpow.pop %v554
    %v556 = vmul.f32 %v541, 1.442695
    %v557 = vpow.pop %v556
    %v558 = vmul.f32 %v542, 1.442695
    %v559 = vpow.pop %v558
    %v560 = vmul.f32 %v543, 1.442695
    %v561 = vpow.pop %v560
    %v562 = vmul.f32 %v544, 1.442695
    %v563 = vpow.pop %v562
    %v564 = vmul.f32 %v545, 1.442695
    %v565 = vpow.pop %v564
    %v566 = vmul.f32 %v546, 1.442695
    %v567 = vpow.pop %v566
    %v568 = vmul.f32 %v547, 1.442695
    %v569 = vpow.pop %v568
    %v570 = vmul.f32 %v548, 1.442695
    %v571 = vpow.pop %v570
    %v572 = vmul.f32 %v549, 1.442695
    %v573 = vpow.pop %v572
    %v574 = vmul.f32 %v550, 1.442695
    %v575 = vpow.pop %v574
    %v576 = vmul.f32 %v551, 1.442695
    %v577 = vpow.pop %v576
    %v578 = vadd.f32 %v553, 1.0
    %v579 = vadd.f32 %v555, 1.0
    %v580 = vadd.f32 %v557, 1.0
    %v581 = vadd.f32 %v559, 1.0
    %v582 = vadd.f32 %v561, 1.0
    %v583 = vadd.f32 %v563, 1.0
    %v584 = vadd.f32 %v565, 1.0
    %v585 = vadd.f32 %v567, 1.0
    %v586 = vadd.f32 %v569, 1.0
    %v587 = vadd.f32 %v571, 1.0
    %v588 = vadd.f32 %v573, 1.0
    %v589 = vadd.f32 %v575, 1.0
    %v590 = vadd.f32 %v577, 1.0
    %v591 = vrcp.pop %v578
    %v592 = vmul.f32 1.0, %v591
    %v593 = vrcp.pop %v579
    %v594 = vmul.f32 1.0, %v593
    %v595 = vrcp.pop %v580
    %v596 = vmul.f32 1.0, %v595
    %v597 = vrcp.pop %v581
    %v598 = vmul.f32 1.0, %v597
    %v599 = vrcp.pop %v582
    %v600 = vmul.f32 1.0, %v599
    %v601 = vrcp.pop %v583
    %v602 = vmul.f32 1.0, %v601
    %v603 = vrcp.pop %v584
    %v604 = vmul.f32 1.0, %v603
    %v605 = vrcp.pop %v585
    %v606 = vmul.f32 1.0, %v605
    %v607 = vrcp.pop %v586
    %v608 = vmul.f32 1.0, %v607
    %v609 = vrcp.pop %v587
    %v610 = vmul.f32 1.0, %v609
    %v611 = vrcp.pop %v588
    %v612 = vmul.f32 1.0, %v611
    %v613 = vrcp.pop %v589
    %v614 = vmul.f32 1.0, %v613
    %v615 = vrcp.pop %v590
    %v616 = vmul.f32 1.0, %v615
    %v617 = vtanh.pop %v385
    %v618 = vtanh.pop %v391
    %v619 = vtanh.pop %v397
    %v620 = vtanh.pop %v403
    %v621 = vtanh.pop %v409
    %v622 = vtanh.pop %v415
    %v623 = vtanh.pop %v421
    %v624 = vtanh.pop %v427
    %v625 = vtanh.pop %v433
    %v626 = vtanh.pop %v439
    %v627 = vtanh.pop %v445
    %v628 = vtanh.pop %v451
    %v629 = vtanh.pop %v457
    %v630 = vxor.u32 %v387, 2147483648
    %v631 = vxor.u32 %v393, 2147483648
    %v632 = vxor.u32 %v399, 2147483648
    %v633 = vxor.u32 %v405, 2147483648
    %v634 = vxor.u32 %v411, 2147483648
    %v635 = vxor.u32 %v417, 2147483648
    %v636 = vxor.u32 %v423, 2147483648
    %v637 = vxor.u32 %v429, 2147483648
    %v638 = vxor.u32 %v435, 2147483648
    %v639 = vxor.u32 %v441, 2147483648
    %v640 = vxor.u32 %v447, 2147483648
    %v641 = vxor.u32 %v453, 2147483648
    %v642 = vxor.u32 %v459, 2147483648
    %v643 = vmul.f32 %v630, 1.442695
    %v644 = vpow.pop %v643
    %v645 = vmul.f32 %v631, 1.442695
    %v646 = vpow.pop %v645
    %v647 = vmul.f32 %v632, 1.442695
    %v648 = vpow.pop %v647
    %v649 = vmul.f32 %v633, 1.442695
    %v650 = vpow.pop %v649
    %v651 = vmul.f32 %v634, 1.442695
    %v652 = vpow.pop %v651
    %v653 = vmul.f32 %v635, 1.442695
    %v654 = vpow.pop %v653
    %v655 = vmul.f32 %v636, 1.442695
    %v656 = vpow.pop %v655
    %v657 = vmul.f32 %v637, 1.442695
    %v658 = vpow.pop %v657
    %v659 = vmul.f32 %v638, 1.442695
    %v660 = vpow.pop %v659
    %v661 = vmul.f32 %v639, 1.442695
    %v662 = vpow.pop %v661
    %v663 = vmul.f32 %v640, 1.442695
    %v664 = vpow.pop %v663
    %v665 = vmul.f32 %v641, 1.442695
    %v666 = vpow.pop %v665
    %v667 = vmul.f32 %v642, 1.442695
    %v668 = vpow.pop %v667
    %v669 = vadd.f32 %v644, 1.0
    %v670 = vadd.f32 %v646, 1.0
    %v671 = vadd.f32 %v648, 1.0
    %v672 = vadd.f32 %v650, 1.0
    %v673 = vadd.f32 %v652, 1.0
    %v674 = vadd.f32 %v654, 1.0
    %v675 = vadd.f32 %v656, 1.0
    %v676 = vadd.f32 %v658, 1.0
    %v677 = vadd.f32 %v660, 1.0
    %v678 = vadd.f32 %v662, 1.0
    %v679 = vadd.f32 %v664, 1.0
    %v680 = vadd.f32 %v666, 1.0
    %v681 = vadd.f32 %v668, 1.0
    %v682 = vrcp.pop %v669
    %v683 = vmul.f32 1.0, %v682
    %v684 = vrcp.pop %v670
    %v685 = vmul.f32 1.0, %v684
    %v686 = vrcp.pop %v671
    %v687 = vmul.f32 1.0, %v686
    %v688 = vrcp.pop %v672
    %v689 = vmul.f32 1.0, %v688
    %v690 = vrcp.pop %v673
    %v691 = vmul.f32 1.0, %v690
    %v692 = vrcp.pop %v674
    %v693 = vmul.f32 1.0, %v692
    %v694 = vrcp.pop %v675
    %v695 = vmul.f32 1.0, %v694
    %v696 = vrcp.pop %v676
    %v697 = vmul.f32 1.0, %v696
    %v698 = vrcp.pop %v677
    %v699 = vmul.f32 1.0, %v698
    %v700 = vrcp.pop %v678
    %v701 = vmul.f32 1.0, %v700
    %v702 = vrcp.pop %v679
    %v703 = vmul.f32 1.0, %v702
    %v704 = vrcp.pop %v680
    %v705 = vmul.f32 1.0, %v704
    %v706 = vrcp.pop %v681
    %v707 = vmul.f32 1.0, %v706
    %v708 = vld [vmem:[%s2] sm:$0x1]
    %v710 = vlaneseq
    %v711 = vshrl.u32 %v710, 7
    %v712 = vsub.s32 0, %v711
    %v713 = vrot.slane %v708, %v712
    %v715 = vmul.f32 %v592, %v713
    %v716 = vmul.f32 %v594, %v713
    %v717 = vmul.f32 %v596, %v713
    %v718 = vmul.f32 %v598, %v713
    %v719 = vmul.f32 %v600, %v713
    %v720 = vmul.f32 %v602, %v713
    %v721 = vmul.f32 %v604, %v713
    %v722 = vmul.f32 %v606, %v713
    %v723 = vmul.f32 %v608, %v713
    %v724 = vmul.f32 %v610, %v713
    %v725 = vmul.f32 %v612, %v713
    %v726 = vmul.f32 %v614, %v713
    %v727 = vmul.f32 %v616, %v713
    %v728 = vmul.f32 %v514, %v617
    %v729 = vmul.f32 %v516, %v618
    %v730 = vmul.f32 %v518, %v619
    %v731 = vmul.f32 %v520, %v620
    %v732 = vmul.f32 %v522, %v621
    %v733 = vmul.f32 %v524, %v622
    %v734 = vmul.f32 %v526, %v623
    %v735 = vmul.f32 %v528, %v624
    %v736 = vmul.f32 %v530, %v625
    %v737 = vmul.f32 %v532, %v626
    %v738 = vmul.f32 %v534, %v627
    %v739 = vmul.f32 %v536, %v628
    %v740 = vmul.f32 %v538, %v629
    %v741 = vadd.f32 %v715, %v728
    %v742 = vadd.f32 %v716, %v729
    %v743 = vadd.f32 %v717, %v730
    %v744 = vadd.f32 %v718, %v731
    %v745 = vadd.f32 %v719, %v732
    %v746 = vadd.f32 %v720, %v733
    %v747 = vadd.f32 %v721, %v734
    %v748 = vadd.f32 %v722, %v735
    %v749 = vadd.f32 %v723, %v736
    %v750 = vadd.f32 %v724, %v737
    %v751 = vadd.f32 %v725, %v738
    %v752 = vadd.f32 %v726, %v739
    %v753 = vadd.f32 %v727, %v740
    %v754 = vtanh.pop %v741
    %v755 = vtanh.pop %v742
    %v756 = vtanh.pop %v743
    %v757 = vtanh.pop %v744
    %v758 = vtanh.pop %v745
    %v759 = vtanh.pop %v746
    %v760 = vtanh.pop %v747
    %v761 = vtanh.pop %v748
    %v762 = vtanh.pop %v749
    %v763 = vtanh.pop %v750
    %v764 = vtanh.pop %v751
    %v765 = vtanh.pop %v752
    %v766 = vtanh.pop %v753
    %v767 = vmul.f32 %v683, %v754
    %v768 = vmul.f32 %v685, %v755
    %v769 = vmul.f32 %v687, %v756
    %v770 = vmul.f32 %v689, %v757
    %v771 = vmul.f32 %v691, %v758
    %v772 = vmul.f32 %v693, %v759
    %v773 = vmul.f32 %v695, %v760
    %v774 = vmul.f32 %v697, %v761
    %v775 = vmul.f32 %v699, %v762
    %v776 = vmul.f32 %v701, %v763
    %v777 = vmul.f32 %v703, %v764
    %v778 = vmul.f32 %v705, %v765
    %v779 = vmul.f32 %v707, %v766
    %v780 = vld [vmem:[#allocation7] sm:$0xff]
    %v781 = vld [vmem:[#allocation7 + $0x8] sm:$0xff]
    %v782 = vld [vmem:[#allocation7 + $0x10] sm:$0xff]
    %v783 = vld [vmem:[#allocation7 + $0x18] sm:$0xff]
    %v784 = vld [vmem:[#allocation7 + $0x20] sm:$0xff]
    %v785 = vld [vmem:[#allocation7 + $0x28] sm:$0xff]
    %v786 = vld [vmem:[#allocation7 + $0x30] sm:$0xff]
    %v787 = vld [vmem:[#allocation7 + $0x38] sm:$0xff]
    %v788 = vld [vmem:[#allocation7 + $0x40] sm:$0xff]
    %v789 = vld [vmem:[#allocation7 + $0x48] sm:$0xff]
    %v790 = vld [vmem:[#allocation7 + $0x50] sm:$0xff]
    %v791 = vld [vmem:[#allocation7 + $0x58] sm:$0xff]
    %v792 = vld [vmem:[#allocation7 + $0x60] sm:$0xff]
    %v793 = vld [vmem:[#allocation7 + $0x68] sm:$0xff]
    %v794 = vld [vmem:[#allocation7 + $0x70] sm:$0xff]
    %v795 = vld [vmem:[#allocation7 + $0x78] sm:$0xff]
    %v796 = vld [vmem:[%s5] sm:$0x1]
    %v798 = vlaneseq
    %v799 = vshrl.u32 %v798, 7
    %v800 = vsub.s32 0, %v799
    %v801 = vrot.slane %v796, %v800
    %803 = vmatprep.subr.mxu0 0.0
    %804 = vmatpush1.msra.mxu0 %v795
    %805 = vmatprep.subr.mxu0 0.0
    %806 = vmatpush1.msra.mxu0 %v794
    %807 = vmatprep.subr.mxu0 0.0
    %808 = vmatpush1.msra.mxu0 %v793
    %809 = vmatprep.subr.mxu0 0.0
    %810 = vmatpush1.msra.mxu0 %v792
    %811 = vmatprep.subr.mxu0 0.0
    %812 = vmatpush1.msra.mxu0 %v791
    %813 = vmatprep.subr.mxu0 0.0
    %814 = vmatpush1.msra.mxu0 %v790
    %815 = vmatprep.subr.mxu0 0.0
    %816 = vmatpush1.msra.mxu0 %v789
    %817 = vmatprep.subr.mxu0 0.0
    %818 = vmatpush1.msra.mxu0 %v788
    %819 = vmatprep.subr.mxu0 0.0
    %820 = vmatpush1.msra.mxu0 %v787
    %821 = vmatprep.subr.mxu0 0.0
    %822 = vmatpush1.msra.mxu0 %v786
    %823 = vmatprep.subr.mxu0 0.0
    %824 = vmatpush1.msra.mxu0 %v785
    %825 = vmatprep.subr.mxu0 0.0
    %826 = vmatpush1.msra.mxu0 %v784
    %827 = vmatprep.subr.mxu0 0.0
    %828 = vmatpush1.msra.mxu0 %v783
    %829 = vmatprep.subr.mxu0 0.0
    %830 = vmatpush1.msra.mxu0 %v782
    %831 = vmatprep.subr.mxu0 0.0
    %832 = vmatpush1.msra.mxu0 %v781
    %833 = vmatprep.subr.mxu0 0.0
    %834 = vmatpush1.msra.mxu0 %v780
    %835 = vmatprep.subr.mxu0 0.0
    %836 = vmatpush2.msra.mxu0 0.0
    %837 = vmatprep.subr.mxu0 0.0
    %838 = vmatpush2.msra.mxu0 0.0
    %839 = vmatprep.subr.mxu0 0.0
    %840 = vmatpush2.msra.mxu0 0.0
    %841 = vmatprep.subr.mxu0 0.0
    %842 = vmatpush2.msra.mxu0 0.0
    %843 = vmatprep.subr.mxu0 0.0
    %844 = vmatpush2.msra.mxu0 0.0
    %845 = vmatprep.subr.mxu0 0.0
    %846 = vmatpush2.msra.mxu0 0.0
    %847 = vmatprep.subr.mxu0 0.0
    %848 = vmatpush2.msra.mxu0 0.0
    %849 = vmatprep.subr.mxu0 0.0
    %850 = vmatpush2.msra.mxu0 0.0
    %851 = vmatprep.subr.mxu0 0.0
    %852 = vmatpush2.msra.mxu0 0.0
    %853 = vmatprep.subr.mxu0 0.0
    %854 = vmatpush2.msra.mxu0 0.0
    %855 = vmatprep.subr.mxu0 0.0
    %856 = vmatpush2.msra.mxu0 0.0
    %857 = vmatprep.subr.mxu0 0.0
    %858 = vmatpush2.msra.mxu0 0.0
    %859 = vmatprep.subr.mxu0 0.0
    %860 = vmatpush2.msra.mxu0 0.0
    %861 = vmatprep.subr.mxu0 0.0
    %862 = vmatpush2.msra.mxu0 0.0
    %863 = vmatprep.subr.mxu0 0.0
    %864 = vmatpush2.msra.mxu0 0.0
    %865 = vmatprep.subr.mxu0 0.0
    %866 = vmatpush2.msra.mxu0 0.0
    %867 = vmatprep.mubr.f32.mxu0 0.0
    %868 = vmatmul.mubr.f32.gmra.mxu0 %v767
    %v869 = vpop.f32.mrf.mxu0
    %v870 = vadd.f32 %v801, %v869
    %v871 = vpop.f32.mrf.mxu0
    %872 = vmatprep.mubr.f32.mxu0 0.0
    %873 = vmatmul.mubr.f32.gmra.mxu0 %v768
    %v874 = vpop.f32.mrf.mxu0
    %v875 = vadd.f32 %v801, %v874
    %v876 = vpop.f32.mrf.mxu0
    %877 = vmatprep.mubr.f32.mxu0 0.0
    %878 = vmatmul.mubr.f32.gmra.mxu0 %v769
    %v879 = vpop.f32.mrf.mxu0
    %v880 = vadd.f32 %v801, %v879
    %v881 = vpop.f32.mrf.mxu0
    %882 = vmatprep.mubr.f32.mxu0 0.0
    %883 = vmatmul.mubr.f32.gmra.mxu0 %v770
    %v884 = vpop.f32.mrf.mxu0
    %v885 = vadd.f32 %v801, %v884
    %v886 = vpop.f32.mrf.mxu0
    %887 = vmatprep.mubr.f32.mxu0 0.0
    %888 = vmatmul.mubr.f32.gmra.mxu0 %v771
    %v889 = vpop.f32.mrf.mxu0
    %v890 = vadd.f32 %v801, %v889
    %v891 = vpop.f32.mrf.mxu0
    %892 = vmatprep.mubr.f32.mxu0 0.0
    %893 = vmatmul.mubr.f32.gmra.mxu0 %v772
    %v894 = vpop.f32.mrf.mxu0
    %v895 = vadd.f32 %v801, %v894
    %v896 = vpop.f32.mrf.mxu0
    %897 = vmatprep.mubr.f32.mxu0 0.0
    %898 = vmatmul.mubr.f32.gmra.mxu0 %v773
    %v899 = vpop.f32.mrf.mxu0
    %v900 = vadd.f32 %v801, %v899
    %v901 = vpop.f32.mrf.mxu0
    %902 = vmatprep.mubr.f32.mxu0 0.0
    %903 = vmatmul.mubr.f32.gmra.mxu0 %v774
    %v904 = vpop.f32.mrf.mxu0
    %v905 = vadd.f32 %v801, %v904
    %v906 = vpop.f32.mrf.mxu0
    %907 = vmatprep.mubr.f32.mxu0 0.0
    %908 = vmatmul.mubr.f32.gmra.mxu0 %v775
    %v909 = vpop.f32.mrf.mxu0
    %v910 = vadd.f32 %v801, %v909
    %v911 = vpop.f32.mrf.mxu0
    %912 = vmatprep.mubr.f32.mxu0 0.0
    %913 = vmatmul.mubr.f32.gmra.mxu0 %v776
    %v914 = vpop.f32.mrf.mxu0
    %v915 = vadd.f32 %v801, %v914
    %v916 = vpop.f32.mrf.mxu0
    %917 = vmatprep.mubr.f32.mxu0 0.0
    %918 = vmatmul.mubr.f32.gmra.mxu0 %v777
    %v919 = vpop.f32.mrf.mxu0
    %v920 = vadd.f32 %v801, %v919
    %v921 = vpop.f32.mrf.mxu0
    %922 = vmatprep.mubr.f32.mxu0 0.0
    %923 = vmatmul.mubr.f32.gmra.mxu0 %v778
    %v924 = vpop.f32.mrf.mxu0
    %v925 = vadd.f32 %v801, %v924
    %v926 = vpop.f32.mrf.mxu0
    %927 = vmatprep.mubr.f32.mxu0 0.0
    %928 = vmatmul.mubr.f32.gmra.mxu0 %v779
    %v929 = vpop.f32.mrf.mxu0
    %v930 = vadd.f32 %v801, %v929
    %v931 = vpop.f32.mrf.mxu0
    %932 = vdwg.mxu0
    %v933 = vlaneseq
    %v934 = vand.u32 %v933, 127
    %935 = vmax.xlane.f32.xlu0 %v870
    %v936 = vpop.xlane.xlu0 %935
    %937 = vmax.xlane.f32.xlu0 %v875
    %v938 = vpop.xlane.xlu0 %937
    %939 = vmax.xlane.f32.xlu0 %v880
    %v940 = vpop.xlane.xlu0 %939
    %941 = vmax.xlane.f32.xlu0 %v885
    %v942 = vpop.xlane.xlu0 %941
    %943 = vmax.xlane.f32.xlu0 %v890
    %v944 = vpop.xlane.xlu0 %943
    %945 = vmax.xlane.f32.xlu0 %v895
    %v946 = vpop.xlane.xlu0 %945
    %947 = vmax.xlane.f32.xlu0 %v900
    %v948 = vpop.xlane.xlu0 %947
    %949 = vmax.xlane.f32.xlu0 %v905
    %v950 = vpop.xlane.xlu0 %949
    %951 = vmax.xlane.f32.xlu0 %v910
    %v952 = vpop.xlane.xlu0 %951
    %953 = vmax.xlane.f32.xlu0 %v915
    %v954 = vpop.xlane.xlu0 %953
    %955 = vmax.xlane.f32.xlu0 %v920
    %v956 = vpop.xlane.xlu0 %955
    %957 = vmax.xlane.f32.xlu0 %v925
    %v958 = vpop.xlane.xlu0 %957
    %959 = vmax.xlane.f32.xlu0 %v930
    %v960 = vpop.xlane.xlu0 %959
    %vm961 = vcmp.eq.f32.partialorder %v870, %v936
    %vm962 = vcmp.eq.f32.partialorder %v875, %v938
    %vm963 = vcmp.eq.f32.partialorder %v880, %v940
    %vm964 = vcmp.eq.f32.partialorder %v885, %v942
    %vm965 = vcmp.eq.f32.partialorder %v890, %v944
    %vm966 = vcmp.eq.f32.partialorder %v895, %v946
    %vm967 = vcmp.eq.f32.partialorder %v900, %v948
    %vm968 = vcmp.eq.f32.partialorder %v905, %v950
    %vm969 = vcmp.eq.f32.partialorder %v910, %v952
    %vm970 = vcmp.eq.f32.partialorder %v915, %v954
    %vm971 = vcmp.eq.f32.partialorder %v920, %v956
    %vm972 = vcmp.eq.f32.partialorder %v925, %v958
    %vm973 = vcmp.eq.f32.partialorder %v930, %v960
    %v974 = vsel %vm961, %v934, 128
    %v975 = vsel %vm962, %v934, 128
    %v976 = vsel %vm963, %v934, 128
    %v977 = vsel %vm964, %v934, 128
    %v978 = vsel %vm965, %v934, 128
    %v979 = vsel %vm966, %v934, 128
    %v980 = vsel %vm967, %v934, 128
    %v981 = vsel %vm968, %v934, 128
    %v982 = vsel %vm969, %v934, 128
    %v983 = vsel %vm970, %v934, 128
    %v984 = vsel %vm971, %v934, 128
    %v985 = vsel %vm972, %v934, 128
    %v986 = vsel %vm973, %v934, 128
    %v987 = vand.u32 %v974, 65535
    %v988 = vshra.s32 %v974, 16
    %v989 = vcvt.s32.f32 %v987
    %v990 = vcvt.s32.f32 %v988
    %991 = vmin.xlane.f32.xlu0 %v990
    %v992 = vpop.xlane.xlu0 %991
    %vm993 = vcmp.eq.f32.partialorder %v990, %v992
    %v994 = vsel %vm993, %v989, inf
    %995 = vmin.xlane.f32.xlu0 %v994
    %v996 = vpop.xlane.xlu0 %995
    %v997 = vcvt.f32.s32 %v996
    %v998 = vcvt.f32.s32 %v992
    %v999 = vshll.u32 %v998, 16
    %v1000 = vadd.s32 %v999, %v997
    %v1001 = vand.u32 %v975, 65535
    %v1002 = vshra.s32 %v975, 16
    %v1003 = vcvt.s32.f32 %v1001
    %v1004 = vcvt.s32.f32 %v1002
    %1005 = vmin.xlane.f32.xlu0 %v1004
    %v1006 = vpop.xlane.xlu0 %1005
    %vm1007 = vcmp.eq.f32.partialorder %v1004, %v1006
    %v1008 = vsel %vm1007, %v1003, inf
    %1009 = vmin.xlane.f32.xlu0 %v1008
    %v1010 = vpop.xlane.xlu0 %1009
    %v1011 = vcvt.f32.s32 %v1010
    %v1012 = vcvt.f32.s32 %v1006
    %v1013 = vshll.u32 %v1012, 16
    %v1014 = vadd.s32 %v1013, %v1011
    %v1015 = vand.u32 %v976, 65535
    %v1016 = vshra.s32 %v976, 16
    %v1017 = vcvt.s32.f32 %v1015
    %v1018 = vcvt.s32.f32 %v1016
    %1019 = vmin.xlane.f32.xlu0 %v1018
    %v1020 = vpop.xlane.xlu0 %1019
    %vm1021 = vcmp.eq.f32.partialorder %v1018, %v1020
    %v1022 = vsel %vm1021, %v1017, inf
    %1023 = vmin.xlane.f32.xlu0 %v1022
    %v1024 = vpop.xlane.xlu0 %1023
    %v1025 = vcvt.f32.s32 %v1024
    %v1026 = vcvt.f32.s32 %v1020
    %v1027 = vshll.u32 %v1026, 16
    %v1028 = vadd.s32 %v1027, %v1025
    %v1029 = vand.u32 %v977, 65535
    %v1030 = vshra.s32 %v977, 16
    %v1031 = vcvt.s32.f32 %v1029
    %v1032 = vcvt.s32.f32 %v1030
    %1033 = vmin.xlane.f32.xlu0 %v1032
    %v1034 = vpop.xlane.xlu0 %1033
    %vm1035 = vcmp.eq.f32.partialorder %v1032, %v1034
    %v1036 = vsel %vm1035, %v1031, inf
    %1037 = vmin.xlane.f32.xlu0 %v1036
    %v1038 = vpop.xlane.xlu0 %1037
    %v1039 = vcvt.f32.s32 %v1038
    %v1040 = vcvt.f32.s32 %v1034
    %v1041 = vshll.u32 %v1040, 16
    %v1042 = vadd.s32 %v1041, %v1039
    %v1043 = vand.u32 %v978, 65535
    %v1044 = vshra.s32 %v978, 16
    %v1045 = vcvt.s32.f32 %v1043
    %v1046 = vcvt.s32.f32 %v1044
    %1047 = vmin.xlane.f32.xlu0 %v1046
    %v1048 = vpop.xlane.xlu0 %1047
    %vm1049 = vcmp.eq.f32.partialorder %v1046, %v1048
    %v1050 = vsel %vm1049, %v1045, inf
    %1051 = vmin.xlane.f32.xlu0 %v1050
    %v1052 = vpop.xlane.xlu0 %1051
    %v1053 = vcvt.f32.s32 %v1052
    %v1054 = vcvt.f32.s32 %v1048
    %v1055 = vshll.u32 %v1054, 16
    %v1056 = vadd.s32 %v1055, %v1053
    %v1057 = vand.u32 %v979, 65535
    %v1058 = vshra.s32 %v979, 16
    %v1059 = vcvt.s32.f32 %v1057
    %v1060 = vcvt.s32.f32 %v1058
    %1061 = vmin.xlane.f32.xlu0 %v1060
    %v1062 = vpop.xlane.xlu0 %1061
    %vm1063 = vcmp.eq.f32.partialorder %v1060, %v1062
    %v1064 = vsel %vm1063, %v1059, inf
    %1065 = vmin.xlane.f32.xlu0 %v1064
    %v1066 = vpop.xlane.xlu0 %1065
    %v1067 = vcvt.f32.s32 %v1066
    %v1068 = vcvt.f32.s32 %v1062
    %v1069 = vshll.u32 %v1068, 16
    %v1070 = vadd.s32 %v1069, %v1067
    %v1071 = vand.u32 %v980, 65535
    %v1072 = vshra.s32 %v980, 16
    %v1073 = vcvt.s32.f32 %v1071
    %v1074 = vcvt.s32.f32 %v1072
    %1075 = vmin.xlane.f32.xlu0 %v1074
    %v1076 = vpop.xlane.xlu0 %1075
    %vm1077 = vcmp.eq.f32.partialorder %v1074, %v1076
    %v1078 = vsel %vm1077, %v1073, inf
    %1079 = vmin.xlane.f32.xlu0 %v1078
    %v1080 = vpop.xlane.xlu0 %1079
    %v1081 = vcvt.f32.s32 %v1080
    %v1082 = vcvt.f32.s32 %v1076
    %v1083 = vshll.u32 %v1082, 16
    %v1084 = vadd.s32 %v1083, %v1081
    %v1085 = vand.u32 %v981, 65535
    %v1086 = vshra.s32 %v981, 16
    %v1087 = vcvt.s32.f32 %v1085
    %v1088 = vcvt.s32.f32 %v1086
    %1089 = vmin.xlane.f32.xlu0 %v1088
    %v1090 = vpop.xlane.xlu0 %1089
    %vm1091 = vcmp.eq.f32.partialorder %v1088, %v1090
    %v1092 = vsel %vm1091, %v1087, inf
    %1093 = vmin.xlane.f32.xlu0 %v1092
    %v1094 = vpop.xlane.xlu0 %1093
    %v1095 = vcvt.f32.s32 %v1094
    %v1096 = vcvt.f32.s32 %v1090
    %v1097 = vshll.u32 %v1096, 16
    %v1098 = vadd.s32 %v1097, %v1095
    %v1099 = vand.u32 %v982, 65535
    %v1100 = vshra.s32 %v982, 16
    %v1101 = vcvt.s32.f32 %v1099
    %v1102 = vcvt.s32.f32 %v1100
    %1103 = vmin.xlane.f32.xlu0 %v1102
    %v1104 = vpop.xlane.xlu0 %1103
    %vm1105 = vcmp.eq.f32.partialorder %v1102, %v1104
    %v1106 = vsel %vm1105, %v1101, inf
    %1107 = vmin.xlane.f32.xlu0 %v1106
    %v1108 = vpop.xlane.xlu0 %1107
    %v1109 = vcvt.f32.s32 %v1108
    %v1110 = vcvt.f32.s32 %v1104
    %v1111 = vshll.u32 %v1110, 16
    %v1112 = vadd.s32 %v1111, %v1109
    %v1113 = vand.u32 %v983, 65535
    %v1114 = vshra.s32 %v983, 16
    %v1115 = vcvt.s32.f32 %v1113
    %v1116 = vcvt.s32.f32 %v1114
    %1117 = vmin.xlane.f32.xlu0 %v1116
    %v1118 = vpop.xlane.xlu0 %1117
    %vm1119 = vcmp.eq.f32.partialorder %v1116, %v1118
    %v1120 = vsel %vm1119, %v1115, inf
    %1121 = vmin.xlane.f32.xlu0 %v1120
    %v1122 = vpop.xlane.xlu0 %1121
    %v1123 = vcvt.f32.s32 %v1122
    %v1124 = vcvt.f32.s32 %v1118
    %v1125 = vshll.u32 %v1124, 16
    %v1126 = vadd.s32 %v1125, %v1123
    %v1127 = vand.u32 %v984, 65535
    %v1128 = vshra.s32 %v984, 16
    %v1129 = vcvt.s32.f32 %v1127
    %v1130 = vcvt.s32.f32 %v1128
    %1131 = vmin.xlane.f32.xlu0 %v1130
    %v1132 = vpop.xlane.xlu0 %1131
    %vm1133 = vcmp.eq.f32.partialorder %v1130, %v1132
    %v1134 = vsel %vm1133, %v1129, inf
    %1135 = vmin.xlane.f32.xlu0 %v1134
    %v1136 = vpop.xlane.xlu0 %1135
    %v1137 = vcvt.f32.s32 %v1136
    %v1138 = vcvt.f32.s32 %v1132
    %v1139 = vshll.u32 %v1138, 16
    %v1140 = vadd.s32 %v1139, %v1137
    %v1141 = vand.u32 %v985, 65535
    %v1142 = vshra.s32 %v985, 16
    %v1143 = vcvt.s32.f32 %v1141
    %v1144 = vcvt.s32.f32 %v1142
    %1145 = vmin.xlane.f32.xlu0 %v1144
    %v1146 = vpop.xlane.xlu0 %1145
    %vm1147 = vcmp.eq.f32.partialorder %v1144, %v1146
    %v1148 = vsel %vm1147, %v1143, inf
    %1149 = vmin.xlane.f32.xlu0 %v1148
    %v1150 = vpop.xlane.xlu0 %1149
    %v1151 = vcvt.f32.s32 %v1150
    %v1152 = vcvt.f32.s32 %v1146
    %v1153 = vshll.u32 %v1152, 16
    %v1154 = vadd.s32 %v1153, %v1151
    %v1155 = vand.u32 %v986, 65535
    %v1156 = vshra.s32 %v986, 16
    %v1157 = vcvt.s32.f32 %v1155
    %v1158 = vcvt.s32.f32 %v1156
    %1159 = vmin.xlane.f32.xlu0 %v1158
    %v1160 = vpop.xlane.xlu0 %1159
    %vm1161 = vcmp.eq.f32.partialorder %v1158, %v1160
    %v1162 = vsel %vm1161, %v1157, inf
    %1163 = vmin.xlane.f32.xlu0 %v1162
    %v1164 = vpop.xlane.xlu0 %1163
    %v1165 = vcvt.f32.s32 %v1164
    %v1166 = vcvt.f32.s32 %v1160
    %v1167 = vshll.u32 %v1166, 16
    %v1168 = vadd.s32 %v1167, %v1165
    %vm1169 = vcmask 7168
    %1170 = vst.msk [vmem:[%s6] sm:$0xff] %vm1169, %v1000
    %1171 = vst.msk [vmem:[%s6 + $0x8] sm:$0xff] %vm1169, %v1014
    %1172 = vst.msk [vmem:[%s6 + $0x10] sm:$0xff] %vm1169, %v1028
    %1173 = vst.msk [vmem:[%s6 + $0x18] sm:$0xff] %vm1169, %v1042
    %1174 = vst.msk [vmem:[%s6 + $0x20] sm:$0xff] %vm1169, %v1056
    %1175 = vst.msk [vmem:[%s6 + $0x28] sm:$0xff] %vm1169, %v1070
    %1176 = vst.msk [vmem:[%s6 + $0x30] sm:$0xff] %vm1169, %v1084
    %1177 = vst.msk [vmem:[%s6 + $0x38] sm:$0xff] %vm1169, %v1098
    %1178 = vst.msk [vmem:[%s6 + $0x40] sm:$0xff] %vm1169, %v1112
    %1179 = vst.msk [vmem:[%s6 + $0x48] sm:$0xff] %vm1169, %v1126
    %1180 = vst.msk [vmem:[%s6 + $0x50] sm:$0xff] %vm1169, %v1140
    %1181 = vst.msk [vmem:[%s6 + $0x58] sm:$0xff] %vm1169, %v1154
    %1182 = vst.msk [vmem:[%s6 + $0x60] sm:$0xff] %vm1169, %v1168
    // Predicated region
    $region42: #{tpu_custom_call.1} parent=1 // pred_check
      _
    $region43: #{tpu_custom_call.1} parent=1 // pred_check_branch
      %1184 = sbr.rel (0) target = $region45
    $region44: #{tpu_custom_call.1} parent=1 // pred_region
      _
    $region45: #{tpu_custom_call.1} parent=1 // pred_fallthru
      _
    // Predicated region
    $region46: #{tpu_custom_call.1} parent=1 // pred_check
      _
    $region47: #{tpu_custom_call.1} parent=1 // pred_check_branch
      %1186 = sbr.rel (0) target = $region49
    $region48: #{tpu_custom_call.1} parent=1 // pred_region
      _
    $region49: #{tpu_custom_call.1} parent=1 // pred_fallthru
      _
    %1187 = vsyncpa [#allocation3], 1
    %1188 = vsyncpa [#allocation5], 1
    %1189 = vsyncpa [#allocation8], 1

</llo_original>
